<compile_context>
chip_gen: v6e
topology: v6e:2x2x1
jax: 0.10.0
libtpu: 0.0.40
codegen_flags: <defaults>
</compile_context>

<pallas_src>
import functools

import jax
import jax.numpy as jnp
from jax.experimental import pallas as pl
from jax.experimental.pallas import tpu as pltpu

NUM_FEATURES = 32
NUM_CLASSES = 2
OUT_PAD = 128          # lane-dense output width (>= NUM_CLASSES)
LN_EPS = 1e-5
LEAKY_SLOPE = 0.01     # nn.LeakyReLU default negative_slope


def _round_up(n, m):
    return (n + m - 1) // m * m


def _layer_norm(h, gamma, beta):
    mean = jnp.mean(h, axis=-1, keepdims=True)
    centered = h - mean
    var = jnp.mean(centered * centered, axis=-1, keepdims=True)
    inv = jax.lax.rsqrt(var + LN_EPS)
    return centered * inv * gamma + beta


def _leaky_relu(h):
    return jnp.where(h > 0, h, LEAKY_SLOPE * h)


def mlp_kernel(x_ref, w1_ref, w2_ref, w3_ref, p_ref, out_ref):
    # x tile: (TB, D_in) bf16; weights bf16; packed small params (8, OUT_PAD) f32.
    x = x_ref[...]
    b1 = p_ref[pl.ds(0, 1), pl.ds(0, NUM_FEATURES)]
    g1 = p_ref[pl.ds(1, 1), pl.ds(0, NUM_FEATURES)]
    be1 = p_ref[pl.ds(2, 1), pl.ds(0, NUM_FEATURES)]
    b2 = p_ref[pl.ds(3, 1), pl.ds(0, NUM_FEATURES)]
    g2 = p_ref[pl.ds(4, 1), pl.ds(0, NUM_FEATURES)]
    be2 = p_ref[pl.ds(5, 1), pl.ds(0, NUM_FEATURES)]
    b3 = p_ref[pl.ds(6, 1), pl.ds(0, OUT_PAD)]

    # Block 1: Linear -> LayerNorm -> LeakyReLU (Dropout is identity in eval).
    h = jnp.dot(x, w1_ref[...], preferred_element_type=jnp.float32) + b1
    h = _leaky_relu(_layer_norm(h, g1, be1))
    # TODO(synk): Dropout(p=0.1) skipped — module forward is evaluated in eval mode.

    # Block 2: Linear -> LayerNorm -> LeakyReLU.
    h = jnp.dot(h.astype(jnp.bfloat16), w2_ref[...],
                preferred_element_type=jnp.float32) + b2
    h = _leaky_relu(_layer_norm(h, g2, be2))

    # Output head: Linear(32 -> 2), zero-padded to OUT_PAD lanes (lane-dense store).
    logits = jnp.dot(h.astype(jnp.bfloat16), w3_ref[...],
                     preferred_element_type=jnp.float32) + b3
    out_ref[...] = logits.astype(out_ref.dtype)


@functools.partial(jax.jit, static_argnames=("block_rows",))
def testing_policy_forward(x, params, *, block_rows=1024):
    """x: [B, input_size] float32. Returns logits [B, NUM_CLASSES] float32."""
    B, D_in = x.shape
    (w1, b1, g1, be1, w2, b2, g2, be2, w3, b3) = params

    # ---- parameter prep (plain JAX; tiny, fused by XLA) -------------------
    xb = x.astype(jnp.bfloat16)
    w1b = w1.astype(jnp.bfloat16)
    w2b = w2.astype(jnp.bfloat16)
    # w3 / b3 zero-padded so the output tile is lane-dense (128-wide).
    w3p = jnp.zeros((NUM_FEATURES, OUT_PAD), jnp.bfloat16).at[:, :NUM_CLASSES].set(
        w3.astype(jnp.bfloat16))
    b3p = jnp.zeros((OUT_PAD,), jnp.float32).at[:NUM_CLASSES].set(
        b3.reshape(-1).astype(jnp.float32))
    # Seven small vectors -> one (8, OUT_PAD) packed array -> a single DMA.
    packed = jnp.zeros((8, OUT_PAD), jnp.float32)
    for r, v in enumerate((b1, g1, be1, b2, g2, be2)):
        packed = packed.at[r, :NUM_FEATURES].set(v.reshape(-1).astype(jnp.float32))
    packed = packed.at[6, :].set(b3p)

    # ---- batch tiling ------------------------------------------------------
    TB = min(block_rows, _round_up(B, 16))   # multiple of 16 (bf16 sublane packing)
    Bp = _round_up(B, TB)
    if Bp != B:
        xb = jnp.pad(xb, ((0, Bp - B), (0, 0)))
    grid = (Bp // TB,)

    nf, dc = NUM_FEATURES, OUT_PAD
    flops = 2 * Bp * (D_in * nf + nf * nf + nf * dc)
    bytes_accessed = (Bp * D_in * 2                      # x (bf16)
                      + (D_in * nf + nf * nf + nf * dc) * 2  # weights (bf16)
                      + 8 * dc * 4                       # packed params
                      + Bp * dc * 4)                     # output (f32)
    cost = pl.CostEstimate(flops=flops, transcendentals=2 * Bp,
                           bytes_accessed=bytes_accessed)

    out = pl.pallas_call(
        mlp_kernel,
        out_shape=jax.ShapeDtypeStruct((Bp, OUT_PAD), jnp.float32),
        grid=grid,
        in_specs=[
            pl.BlockSpec((TB, D_in), lambda i: (i, 0)),                    # x (tiled)
            pl.BlockSpec((D_in, NUM_FEATURES), lambda i: (0, 0)),          # w1 (resident)
            pl.BlockSpec((NUM_FEATURES, NUM_FEATURES), lambda i: (0, 0)),  # w2 (resident)
            pl.BlockSpec((NUM_FEATURES, OUT_PAD), lambda i: (0, 0)),       # w3 padded
            pl.BlockSpec((8, OUT_PAD), lambda i: (0, 0)),                  # packed small params
        ],
        out_specs=pl.BlockSpec((TB, OUT_PAD), lambda i: (i, 0)),
        compiler_params=pltpu.CompilerParams(dimension_semantics=("parallel",)),
        cost_estimate=cost,
    )(xb, w1b, w2b, w3p, packed)

    return out[:B, :NUM_CLASSES]


def init_params(key, input_size):
    """Deterministic parameter init matching the module's layer shapes."""
    ks = jax.random.split(key, 3)

    def linear(k, fan_in, fan_out):
        kw, kb = jax.random.split(k)
        bound = 1.0 / jnp.sqrt(jnp.float32(fan_in))
        # weights stored as [in, out] (transposed vs. PyTorch's [out, in])
        w = jax.random.uniform(kw, (fan_in, fan_out), jnp.float32, -bound, bound)
        b = jax.random.uniform(kb, (1, fan_out), jnp.float32, -bound, bound)
        return w, b

    w1, b1 = linear(ks[0], input_size, NUM_FEATURES)
    w2, b2 = linear(ks[1], NUM_FEATURES, NUM_FEATURES)
    w3, b3 = linear(ks[2], NUM_FEATURES, NUM_CLASSES)
    g1 = jnp.ones((1, NUM_FEATURES), jnp.float32)
    be1 = jnp.zeros((1, NUM_FEATURES), jnp.float32)
    g2 = jnp.ones((1, NUM_FEATURES), jnp.float32)
    be2 = jnp.zeros((1, NUM_FEATURES), jnp.float32)
    return (w1, b1, g1, be1, w2, b2, g2, be2, w3, b3)


def reference_forward(x, params, *, quantize=False):
    """Pure-JAX reference. quantize=True mimics the kernel's bf16 operand rounding."""
    (w1, b1, g1, be1, w2, b2, g2, be2, w3, b3) = params
    cast = ((lambda a: a.astype(jnp.bfloat16).astype(jnp.float32))
            if quantize else (lambda a: a))
    h = cast(x) @ cast(w1) + b1
    h = _leaky_relu(_layer_norm(h, g1, be1))
    h = cast(h) @ cast(w2) + b2
    h = _leaky_relu(_layer_norm(h, g2, be2))
    return cast(h) @ cast(w3) + b3


if __name__ == "__main__":
    key = jax.random.PRNGKey(0)
    k_param, k_small, k_big = jax.random.split(key, 3)

    INPUT_SIZE = 32
    params = init_params(k_param, INPUT_SIZE)

    # Small, module-scale batch.
    x_small = jax.random.normal(k_small, (8, INPUT_SIZE), jnp.float32)
    # Larger batch exercising the tiled/pipelined grid path and row padding.
    x_big = jax.random.normal(k_big, (1037, INPUT_SIZE), jnp.float32)

    for x in (x_small, x_big):
        logits = testing_policy_forward(x, params)
        jax.block_until_ready(logits)
        assert logits.shape == (x.shape[0], NUM_CLASSES)

        # Strict check: same bf16-rounded operands, f32 math (validates the kernel).
        ref_q = reference_forward(x, params, quantize=True)
        assert jnp.allclose(logits, ref_q, atol=5e-3, rtol=5e-3), "mismatch vs bf16 ref"

        # Relaxed check vs the pure-f32 (PyTorch-equivalent) reference — the only
        # difference is the deliberate bf16 operand quantization.
        ref = reference_forward(x, params)
        assert jnp.allclose(logits, ref, atol=2e-2, rtol=2e-2), "mismatch vs f32 ref"

    print("KERNEL_OK")
</pallas_src>

<mosaic_0001>
module attributes {stable_mosaic.version = 11 : i64} {
  func.func @mlp_kernel(%arg0: i32, %arg1: memref<16x32xbf16, #tpu.memory_space<vmem>>, %arg2: memref<32x32xbf16, #tpu.memory_space<vmem>>, %arg3: memref<32x32xbf16, #tpu.memory_space<vmem>>, %arg4: memref<32x128xbf16, #tpu.memory_space<vmem>>, %arg5: memref<8x128xf32, #tpu.memory_space<vmem>>, %arg6: memref<16x128xf32, #tpu.memory_space<vmem>>) attributes {dimension_semantics = [#tpu.dimension_semantics<parallel>], iteration_bounds = array<i64: 1>, scalar_prefetch = 0 : i64, scratch_operands = 0 : i64, tpu.core_type = #tpu.core_type<tc>, window_params = [{transform_indices = @transform_0, window_bounds = array<i64: 16, 32>}, {pipeline_mode = #tpu.pipeline_mode<synchronous>, transform_indices = @transform_1, window_bounds = array<i64: 32, 32>}, {pipeline_mode = #tpu.pipeline_mode<synchronous>, transform_indices = @transform_2, window_bounds = array<i64: 32, 32>}, {pipeline_mode = #tpu.pipeline_mode<synchronous>, transform_indices = @transform_3, window_bounds = array<i64: 32, 128>}, {pipeline_mode = #tpu.pipeline_mode<synchronous>, transform_indices = @transform_4, window_bounds = array<i64: 8, 128>}, {transform_indices = @transform_5, window_bounds = array<i64: 16, 128>}]} {
    %c0 = arith.constant 0 : index
    %c0_0 = arith.constant 0 : index
    %0 = vector.load %arg1[%c0, %c0_0] : memref<16x32xbf16, #tpu.memory_space<vmem>>, vector<16x32xbf16>
    %c0_1 = arith.constant 0 : index
    %c0_2 = arith.constant 0 : index
    %1 = vector.load %arg5[%c0_1, %c0_2] : memref<8x128xf32, #tpu.memory_space<vmem>>, vector<1x32xf32>
    %c1 = arith.constant 1 : index
    %c0_3 = arith.constant 0 : index
    %2 = vector.load %arg5[%c1, %c0_3] : memref<8x128xf32, #tpu.memory_space<vmem>>, vector<1x32xf32>
    %c2 = arith.constant 2 : index
    %c0_4 = arith.constant 0 : index
    %3 = vector.load %arg5[%c2, %c0_4] : memref<8x128xf32, #tpu.memory_space<vmem>>, vector<1x32xf32>
    %c3 = arith.constant 3 : index
    %c0_5 = arith.constant 0 : index
    %4 = vector.load %arg5[%c3, %c0_5] : memref<8x128xf32, #tpu.memory_space<vmem>>, vector<1x32xf32>
    %c4 = arith.constant 4 : index
    %c0_6 = arith.constant 0 : index
    %5 = vector.load %arg5[%c4, %c0_6] : memref<8x128xf32, #tpu.memory_space<vmem>>, vector<1x32xf32>
    %c5 = arith.constant 5 : index
    %c0_7 = arith.constant 0 : index
    %6 = vector.load %arg5[%c5, %c0_7] : memref<8x128xf32, #tpu.memory_space<vmem>>, vector<1x32xf32>
    %c6 = arith.constant 6 : index
    %c0_8 = arith.constant 0 : index
    %7 = vector.load %arg5[%c6, %c0_8] : memref<8x128xf32, #tpu.memory_space<vmem>>, vector<1x128xf32>
    %c0_9 = arith.constant 0 : index
    %c0_10 = arith.constant 0 : index
    %8 = vector.load %arg2[%c0_9, %c0_10] : memref<32x32xbf16, #tpu.memory_space<vmem>>, vector<32x32xbf16>
    %cst = arith.constant dense<0.000000e+00> : vector<16x32xf32>
    %9 = tpu.matmul %0, %8, %cst {dimension_numbers = #tpu.dot_dimension_numbers<[1], [0], [0], [1], [0, 0, 1, 1], [], []>} : vector<16x32xbf16>, vector<32x32xbf16>, vector<16x32xf32> -> vector<16x32xf32>
    %10 = vector.broadcast %1 : vector<1x32xf32> to vector<16x32xf32>
    %11 = arith.addf %9, %10 : vector<16x32xf32>
    %cst_11 = arith.constant dense<0.000000e+00> : vector<16xf32>
    %12 = vector.multi_reduction <add>, %11, %cst_11 [1] : vector<16x32xf32> to vector<16xf32>
    %13 = vector.shape_cast %12 : vector<16xf32> to vector<16x1xf32>
    %cst_12 = arith.constant 3.200000e+01 : f32
    %14 = vector.broadcast %cst_12 : f32 to vector<16x1xf32>
    %15 = arith.divf %13, %14 : vector<16x1xf32>
    %16 = vector.broadcast %15 : vector<16x1xf32> to vector<16x32xf32>
    %17 = arith.subf %11, %16 : vector<16x32xf32>
    %18 = arith.mulf %17, %17 : vector<16x32xf32>
    %cst_13 = arith.constant dense<0.000000e+00> : vector<16xf32>
    %19 = vector.multi_reduction <add>, %18, %cst_13 [1] : vector<16x32xf32> to vector<16xf32>
    %20 = vector.shape_cast %19 : vector<16xf32> to vector<16x1xf32>
    %cst_14 = arith.constant 3.200000e+01 : f32
    %21 = vector.broadcast %cst_14 : f32 to vector<16x1xf32>
    %22 = arith.divf %20, %21 : vector<16x1xf32>
    %cst_15 = arith.constant 9.99999974E-6 : f32
    %23 = vector.broadcast %cst_15 : f32 to vector<16x1xf32>
    %24 = arith.addf %22, %23 : vector<16x1xf32>
    %25 = math.rsqrt %24 : vector<16x1xf32>
    %26 = vector.broadcast %25 : vector<16x1xf32> to vector<16x32xf32>
    %27 = arith.mulf %17, %26 : vector<16x32xf32>
    %28 = vector.broadcast %2 : vector<1x32xf32> to vector<16x32xf32>
    %29 = arith.mulf %27, %28 : vector<16x32xf32>
    %30 = vector.broadcast %3 : vector<1x32xf32> to vector<16x32xf32>
    %31 = arith.addf %29, %30 : vector<16x32xf32>
    %cst_16 = arith.constant 0.000000e+00 : f32
    %32 = vector.broadcast %cst_16 : f32 to vector<16x32xf32>
    %33 = arith.cmpf ogt, %31, %32 : vector<16x32xf32>
    %cst_17 = arith.constant 0.00999999977 : f32
    %34 = vector.broadcast %cst_17 : f32 to vector<16x32xf32>
    %35 = arith.mulf %34, %31 : vector<16x32xf32>
    %36 = arith.select %33, %31, %35 : vector<16x32xi1>, vector<16x32xf32>
    %37 = arith.truncf %36 : vector<16x32xf32> to vector<16x32xbf16>
    %c0_18 = arith.constant 0 : index
    %c0_19 = arith.constant 0 : index
    %38 = vector.load %arg3[%c0_18, %c0_19] : memref<32x32xbf16, #tpu.memory_space<vmem>>, vector<32x32xbf16>
    %cst_20 = arith.constant dense<0.000000e+00> : vector<16x32xf32>
    %39 = tpu.matmul %37, %38, %cst_20 {dimension_numbers = #tpu.dot_dimension_numbers<[1], [0], [0], [1], [0, 0, 1, 1], [], []>} : vector<16x32xbf16>, vector<32x32xbf16>, vector<16x32xf32> -> vector<16x32xf32>
    %40 = vector.broadcast %4 : vector<1x32xf32> to vector<16x32xf32>
    %41 = arith.addf %39, %40 : vector<16x32xf32>
    %cst_21 = arith.constant dense<0.000000e+00> : vector<16xf32>
    %42 = vector.multi_reduction <add>, %41, %cst_21 [1] : vector<16x32xf32> to vector<16xf32>
    %43 = vector.shape_cast %42 : vector<16xf32> to vector<16x1xf32>
    %cst_22 = arith.constant 3.200000e+01 : f32
    %44 = vector.broadcast %cst_22 : f32 to vector<16x1xf32>
    %45 = arith.divf %43, %44 : vector<16x1xf32>
    %46 = vector.broadcast %45 : vector<16x1xf32> to vector<16x32xf32>
    %47 = arith.subf %41, %46 : vector<16x32xf32>
    %48 = arith.mulf %47, %47 : vector<16x32xf32>
    %cst_23 = arith.constant dense<0.000000e+00> : vector<16xf32>
    %49 = vector.multi_reduction <add>, %48, %cst_23 [1] : vector<16x32xf32> to vector<16xf32>
    %50 = vector.shape_cast %49 : vector<16xf32> to vector<16x1xf32>
    %cst_24 = arith.constant 3.200000e+01 : f32
    %51 = vector.broadcast %cst_24 : f32 to vector<16x1xf32>
    %52 = arith.divf %50, %51 : vector<16x1xf32>
    %cst_25 = arith.constant 9.99999974E-6 : f32
    %53 = vector.broadcast %cst_25 : f32 to vector<16x1xf32>
    %54 = arith.addf %52, %53 : vector<16x1xf32>
    %55 = math.rsqrt %54 : vector<16x1xf32>
    %56 = vector.broadcast %55 : vector<16x1xf32> to vector<16x32xf32>
    %57 = arith.mulf %47, %56 : vector<16x32xf32>
    %58 = vector.broadcast %5 : vector<1x32xf32> to vector<16x32xf32>
    %59 = arith.mulf %57, %58 : vector<16x32xf32>
    %60 = vector.broadcast %6 : vector<1x32xf32> to vector<16x32xf32>
    %61 = arith.addf %59, %60 : vector<16x32xf32>
    %cst_26 = arith.constant 0.000000e+00 : f32
    %62 = vector.broadcast %cst_26 : f32 to vector<16x32xf32>
    %63 = arith.cmpf ogt, %61, %62 : vector<16x32xf32>
    %cst_27 = arith.constant 0.00999999977 : f32
    %64 = vector.broadcast %cst_27 : f32 to vector<16x32xf32>
    %65 = arith.mulf %64, %61 : vector<16x32xf32>
    %66 = arith.select %63, %61, %65 : vector<16x32xi1>, vector<16x32xf32>
    %67 = arith.truncf %66 : vector<16x32xf32> to vector<16x32xbf16>
    %c0_28 = arith.constant 0 : index
    %c0_29 = arith.constant 0 : index
    %68 = vector.load %arg4[%c0_28, %c0_29] : memref<32x128xbf16, #tpu.memory_space<vmem>>, vector<32x128xbf16>
    %cst_30 = arith.constant dense<0.000000e+00> : vector<16x128xf32>
    %69 = tpu.matmul %67, %68, %cst_30 {dimension_numbers = #tpu.dot_dimension_numbers<[1], [0], [0], [1], [0, 0, 1, 1], [], []>} : vector<16x32xbf16>, vector<32x128xbf16>, vector<16x128xf32> -> vector<16x128xf32>
    %70 = vector.broadcast %7 : vector<1x128xf32> to vector<16x128xf32>
    %71 = arith.addf %69, %70 : vector<16x128xf32>
    %c0_31 = arith.constant 0 : index
    %c0_32 = arith.constant 0 : index
    %72 = vector.load %arg6[%c0_31, %c0_32] : memref<16x128xf32, #tpu.memory_space<vmem>>, vector<16x128xf32>
    tpu.vector_store %arg6[%c0_31, %c0_32], %71 {strides = array<i32>} : memref<16x128xf32, #tpu.memory_space<vmem>>, vector<16x128xf32>,
    return
  }
  func.func @transform_0(%arg0: i32) -> (i32, i32) {
    %c0_i32 = arith.constant 0 : i32
    %c0_i32_0 = arith.constant 0 : i32
    return %arg0, %c0_i32 : i32, i32
  }
  func.func @transform_1(%arg0: i32) -> (i32, i32) {
    %c0_i32 = arith.constant 0 : i32
    %c0_i32_0 = arith.constant 0 : i32
    %c0_i32_1 = arith.constant 0 : i32
    return %c0_i32, %c0_i32_0 : i32, i32
  }
  func.func @transform_2(%arg0: i32) -> (i32, i32) {
    %c0_i32 = arith.constant 0 : i32
    %c0_i32_0 = arith.constant 0 : i32
    %c0_i32_1 = arith.constant 0 : i32
    return %c0_i32, %c0_i32_0 : i32, i32
  }
  func.func @transform_3(%arg0: i32) -> (i32, i32) {
    %c0_i32 = arith.constant 0 : i32
    %c0_i32_0 = arith.constant 0 : i32
    %c0_i32_1 = arith.constant 0 : i32
    return %c0_i32, %c0_i32_0 : i32, i32
  }
  func.func @transform_4(%arg0: i32) -> (i32, i32) {
    %c0_i32 = arith.constant 0 : i32
    %c0_i32_0 = arith.constant 0 : i32
    %c0_i32_1 = arith.constant 0 : i32
    return %c0_i32, %c0_i32_0 : i32, i32
  }
  func.func @transform_5(%arg0: i32) -> (i32, i32) {
    %c0_i32 = arith.constant 0 : i32
    %c0_i32_0 = arith.constant 0 : i32
    return %arg0, %c0_i32 : i32, i32
  }
}

</mosaic_0001>

<llo_original>
// kernel: testing_policy_forward.1
$region0: #{testing_policy_forward.1}
  #allocation0 [shape = 'u32[]', space=smem, size = 0x4, offset = 0x4, fixed_abs, tag = 'smem constant byte address 0x4 - core index']
  #allocation1 [shape = 'u32[144,128]{1,0:T(1,128)}', space=vmem, size = 0x12000, scoped, tag = 'internal scratch']
  %s0 = inlined_call_operand.vmem [shape: bf16[16,32], index: 0, kind: input, shape index: {}]
  %s1 = inlined_call_operand.vmem [shape: bf16[32,32], index: 1, kind: input, shape index: {}]
  %s2 = inlined_call_operand.vmem [shape: bf16[32,32], index: 2, kind: input, shape index: {}]
  %s3 = inlined_call_operand.vmem [shape: bf16[32,128], index: 3, kind: input, shape index: {}]
  %s4 = inlined_call_operand.vmem [shape: f32[8,128], index: 4, kind: input, shape index: {}]
  %s5 = inlined_call_operand.vmem [shape: f32[16,128], index: 5, kind: output, shape index: {}]
  %s6 = sld [smem:[#allocation0]]
  $region30: #{testing_policy_forward.1} parent=0
    _
  %s8 = ssub.s32 1, %s6
  %s9 = scalar_select 0, %s8, %s6
  // Predicated region
  $region2: #{testing_policy_forward.1} parent=0 // pred_check
    _
  $region3: #{testing_policy_forward.1} parent=0 // pred_check_branch
    %11 = sbr.rel (0) target = $region5
  $region4: #{testing_policy_forward.1} parent=0 // pred_region
    _
  $region5: #{testing_policy_forward.1} parent=0 // pred_fallthru
    _
  // Predicated region
  $region6: #{testing_policy_forward.1} parent=0 // pred_check
    _
  $region7: #{testing_policy_forward.1} parent=0 // pred_check_branch
    %13 = sbr.rel (0) target = $region9
  $region8: #{testing_policy_forward.1} parent=0 // pred_region
    _
  $region9: #{testing_policy_forward.1} parent=0 // pred_fallthru
    _
  // Predicated region
  $region10: #{testing_policy_forward.1} parent=0 // pred_check
    _
  $region11: #{testing_policy_forward.1} parent=0 // pred_check_branch
    %15 = sbr.rel (0) target = $region13
  $region12: #{testing_policy_forward.1} parent=0 // pred_region
    _
  $region13: #{testing_policy_forward.1} parent=0 // pred_fallthru
    _
  // Predicated region
  $region14: #{testing_policy_forward.1} parent=0 // pred_check
    _
  $region15: #{testing_policy_forward.1} parent=0 // pred_check_branch
    %17 = sbr.rel (0) target = $region17
  $region16: #{testing_policy_forward.1} parent=0 // pred_region
    _
  $region17: #{testing_policy_forward.1} parent=0 // pred_fallthru
    _
  // Predicated region
  $region18: #{testing_policy_forward.1} parent=0 // pred_check
    _
  $region19: #{testing_policy_forward.1} parent=0 // pred_check_branch
    %19 = sbr.rel (0) target = $region21
  $region20: #{testing_policy_forward.1} parent=0 // pred_region
    _
  $region21: #{testing_policy_forward.1} parent=0 // pred_fallthru
    _
  %v21 = vld [vmem:[%s0] sm:$0xf]
  %v22 = vld [vmem:[%s0 + $0x4] sm:$0xf]
  %v23 = vld [vmem:[%s4] sm:$0x1]
  %v24 = vld [vmem:[%s4 + $0x1] sm:$0x1]
  %v25 = vld [vmem:[%s4 + $0x2] sm:$0x1]
  %v26 = vld [vmem:[%s4 + $0x3] sm:$0x1]
  %v27 = vld [vmem:[%s4 + $0x4] sm:$0x1]
  %v28 = vld [vmem:[%s4 + $0x5] sm:$0x1]
  %v29 = vld [vmem:[%s4 + $0x6] sm:$0x1]
  %v30 = vld [vmem:[%s1] sm:$0xf]
  %v31 = vld [vmem:[%s1 + $0x4] sm:$0xf]
  %v32 = vld [vmem:[%s1 + $0x8] sm:$0xf]
  %v33 = vld [vmem:[%s1 + $0xc] sm:$0xf]
  %v34 = vlaneseq
  %v35 = vshrl.u32 %v34, 7
  %v36 = vsub.s32 0, %v35
  %v37 = vrot.slane %v23, %v36
  %v40 = vunpack.c.l.b16 %v21
  %v41 = vunpack.c.l.b16 %v22
  %v42 = vpack.c.b16 %v41, %v40
  %v47 = vunpack.c.l.b16 %v30
  %v48 = vunpack.c.l.b16 %v31
  %v49 = vunpack.c.l.b16 %v32
  %v50 = vunpack.c.l.b16 %v33
  %v51 = vpack.c.b16 %v48, %v47
  %v52 = vpack.c.b16 %v50, %v49
  %vm55 = vcmask 261120
  %v57 = vsel %vm55, %v42, 0
  %59 = vmatprep.subr.bf16.mxu0 0
  %60 = vmatpush1.bf16.msra.mxu0 0
  %61 = vmatprep.subr.bf16.mxu0 0
  %62 = vmatpush1.bf16.msra.mxu0 0
  %63 = vmatprep.subr.bf16.mxu0 0
  %64 = vmatpush1.bf16.msra.mxu0 0
  %65 = vmatprep.subr.bf16.mxu0 0
  %66 = vmatpush1.bf16.msra.mxu0 0
  %67 = vmatprep.subr.bf16.mxu0 0
  %68 = vmatpush1.bf16.msra.mxu0 0
  %69 = vmatprep.subr.bf16.mxu0 0
  %70 = vmatpush1.bf16.msra.mxu0 0
  %71 = vmatprep.subr.bf16.mxu0 0
  %72 = vmatpush1.bf16.msra.mxu0 %v52
  %73 = vmatprep.subr.bf16.mxu0 0
  %74 = vmatpush1.bf16.msra.mxu0 %v51
  %75 = vmatprep.subr.bf16.mxu0 0
  %76 = vmatpush2.bf16.msra.mxu0 0
  %77 = vmatprep.subr.bf16.mxu0 0
  %78 = vmatpush2.bf16.msra.mxu0 0
  %79 = vmatprep.subr.bf16.mxu0 0
  %80 = vmatpush2.bf16.msra.mxu0 0
  %81 = vmatprep.subr.bf16.mxu0 0
  %82 = vmatpush2.bf16.msra.mxu0 0
  %83 = vmatprep.subr.bf16.mxu0 0
  %84 = vmatpush2.bf16.msra.mxu0 0
  %85 = vmatprep.subr.bf16.mxu0 0
  %86 = vmatpush2.bf16.msra.mxu0 0
  %87 = vmatprep.subr.bf16.mxu0 0
  %88 = vmatpush2.bf16.msra.mxu0 0
  %89 = vmatprep.subr.bf16.mxu0 0
  %90 = vmatpush2.bf16.msra.mxu0 0
  %91 = vmatprep.mubr.bf16.mxu0 0
  %92 = vmatmul.mubr.bf16.gmra.mxu0 %v57
  %v93 = vpop.f32.mrf.mxu0
  %v94 = vadd.f32 %v37, %v93
  %v95 = vpop.f32.mrf.mxu0
  %v96 = vpop.f32.mrf.mxu0
  %v97 = vadd.f32 %v37, %v96
  %v98 = vpop.f32.mrf.mxu0
  %99 = vdwg.mxu0
  %v100 = vsel %vm55, %v94, 0.0
  %101 = vadd.xlane.f32.xlu0 %v100
  %v102 = vpop.xlane.xlu0 %101
  %v103 = vsel %vm55, %v97, 0.0
  %104 = vadd.xlane.f32.xlu0 %v103
  %v105 = vpop.xlane.xlu0 %104
  %v106 = vrcp.pop 32.0
  %v107 = vmul.f32 %v102, %v106
  %v108 = vmul.f32 %v105, %v106
  %v109 = vsub.f32 %v94, %v107
  %v110 = vsub.f32 %v97, %v108
  %v111 = vmul.f32 %v109, %v109
  %v112 = vmul.f32 %v110, %v110
  %v113 = vsel %vm55, %v111, 0.0
  %114 = vadd.xlane.f32.xlu0 %v113
  %v115 = vpop.xlane.xlu0 %114
  %v116 = vsel %vm55, %v112, 0.0
  %117 = vadd.xlane.f32.xlu0 %v116
  %v118 = vpop.xlane.xlu0 %117
  %v119 = vmul.f32 %v115, %v106
  %v120 = vmul.f32 %v118, %v106
  %v121 = vadd.f32 %v119, 1e-05
  %v122 = vadd.f32 %v120, 1e-05
  %v123 = vrsqrt.pop %v121
  %v124 = vrsqrt.pop %v122
  %v125 = vmul.f32 %v109, %v123
  %v126 = vmul.f32 %v110, %v124
  %v127 = vlaneseq
  %v128 = vshrl.u32 %v127, 7
  %v129 = vsub.s32 0, %v128
  %v130 = vrot.slane %v24, %v129
  %v131 = vmul.f32 %v125, %v130
  %v132 = vmul.f32 %v126, %v130
  %v133 = vlaneseq
  %v134 = vshrl.u32 %v133, 7
  %v135 = vsub.s32 0, %v134
  %v136 = vrot.slane %v25, %v135
  %v137 = vadd.f32 %v131, %v136
  %v138 = vadd.f32 %v132, %v136
  %vm139 = vcmp.gt.f32.partialorder %v137, 0.0
  %vm140 = vcmp.gt.f32.partialorder %v138, 0.0
  %v141 = vmul.f32 %v137, 0.01
  %v142 = vmul.f32 %v138, 0.01
  %v143 = vsel %vm139, %v137, %v141
  %v144 = vsel %vm140, %v138, %v142
  %v145 = vpack.c.bf16 %v144, %v143
  %v146 = vld [vmem:[%s2] sm:$0xf]
  %v147 = vld [vmem:[%s2 + $0x4] sm:$0xf]
  %v148 = vld [vmem:[%s2 + $0x8] sm:$0xf]
  %v149 = vld [vmem:[%s2 + $0xc] sm:$0xf]
  %v150 = vlaneseq
  %v151 = vshrl.u32 %v150, 7
  %v152 = vsub.s32 0, %v151
  %v153 = vrot.slane %v26, %v152
  %v158 = vunpack.c.l.b16 %v146
  %v159 = vunpack.c.l.b16 %v147
  %v160 = vunpack.c.l.b16 %v148
  %v161 = vunpack.c.l.b16 %v149
  %v162 = vpack.c.b16 %v159, %v158
  %v163 = vpack.c.b16 %v161, %v160
  %v167 = vsel %vm55, %v145, 0
  %169 = vmatprep.subr.bf16.mxu0 0
  %170 = vmatpush1.bf16.msra.mxu0 0
  %171 = vmatprep.subr.bf16.mxu0 0
  %172 = vmatpush1.bf16.msra.mxu0 0
  %173 = vmatprep.subr.bf16.mxu0 0
  %174 = vmatpush1.bf16.msra.mxu0 0
  %175 = vmatprep.subr.bf16.mxu0 0
  %176 = vmatpush1.bf16.msra.mxu0 0
  %177 = vmatprep.subr.bf16.mxu0 0
  %178 = vmatpush1.bf16.msra.mxu0 0
  %179 = vmatprep.subr.bf16.mxu0 0
  %180 = vmatpush1.bf16.msra.mxu0 0
  %181 = vmatprep.subr.bf16.mxu0 0
  %182 = vmatpush1.bf16.msra.mxu0 %v163
  %183 = vmatprep.subr.bf16.mxu0 0
  %184 = vmatpush1.bf16.msra.mxu0 %v162
  %185 = vmatprep.subr.bf16.mxu0 0
  %186 = vmatpush2.bf16.msra.mxu0 0
  %187 = vmatprep.subr.bf16.mxu0 0
  %188 = vmatpush2.bf16.msra.mxu0 0
  %189 = vmatprep.subr.bf16.mxu0 0
  %190 = vmatpush2.bf16.msra.mxu0 0
  %191 = vmatprep.subr.bf16.mxu0 0
  %192 = vmatpush2.bf16.msra.mxu0 0
  %193 = vmatprep.subr.bf16.mxu0 0
  %194 = vmatpush2.bf16.msra.mxu0 0
  %195 = vmatprep.subr.bf16.mxu0 0
  %196 = vmatpush2.bf16.msra.mxu0 0
  %197 = vmatprep.subr.bf16.mxu0 0
  %198 = vmatpush2.bf16.msra.mxu0 0
  %199 = vmatprep.subr.bf16.mxu0 0
  %200 = vmatpush2.bf16.msra.mxu0 0
  %201 = vmatprep.mubr.bf16.mxu0 0
  %202 = vmatmul.mubr.bf16.gmra.mxu0 %v167
  %v203 = vpop.f32.mrf.mxu0
  %v204 = vadd.f32 %v153, %v203
  %v205 = vpop.f32.mrf.mxu0
  %v206 = vpop.f32.mrf.mxu0
  %v207 = vadd.f32 %v153, %v206
  %v208 = vpop.f32.mrf.mxu0
  %209 = vdwg.mxu0
  %v210 = vsel %vm55, %v204, 0.0
  %211 = vadd.xlane.f32.xlu0 %v210
  %v212 = vpop.xlane.xlu0 %211
  %v213 = vsel %vm55, %v207, 0.0
  %214 = vadd.xlane.f32.xlu0 %v213
  %v215 = vpop.xlane.xlu0 %214
  %v216 = vmul.f32 %v212, %v106
  %v217 = vmul.f32 %v215, %v106
  %v218 = vsub.f32 %v204, %v216
  %v219 = vsub.f32 %v207, %v217
  %v220 = vmul.f32 %v218, %v218
  %v221 = vmul.f32 %v219, %v219
  %v222 = vsel %vm55, %v220, 0.0
  %223 = vadd.xlane.f32.xlu0 %v222
  %v224 = vpop.xlane.xlu0 %223
  %v225 = vsel %vm55, %v221, 0.0
  %226 = vadd.xlane.f32.xlu0 %v225
  %v227 = vpop.xlane.xlu0 %226
  %v228 = vmul.f32 %v224, %v106
  %v229 = vmul.f32 %v227, %v106
  %v230 = vadd.f32 %v228, 1e-05
  %v231 = vadd.f32 %v229, 1e-05
  %v232 = vrsqrt.pop %v230
  %v233 = vrsqrt.pop %v231
  %v234 = vmul.f32 %v218, %v232
  %v235 = vmul.f32 %v219, %v233
  %v236 = vlaneseq
  %v237 = vshrl.u32 %v236, 7
  %v238 = vsub.s32 0, %v237
  %v239 = vrot.slane %v27, %v238
  %v240 = vmul.f32 %v234, %v239
  %v241 = vmul.f32 %v235, %v239
  %v242 = vlaneseq
  %v243 = vshrl.u32 %v242, 7
  %v244 = vsub.s32 0, %v243
  %v245 = vrot.slane %v28, %v244
  %v246 = vadd.f32 %v240, %v245
  %v247 = vadd.f32 %v241, %v245
  %vm248 = vcmp.gt.f32.partialorder %v246, 0.0
  %vm249 = vcmp.gt.f32.partialorder %v247, 0.0
  %v250 = vmul.f32 %v246, 0.01
  %v251 = vmul.f32 %v247, 0.01
  %v252 = vsel %vm248, %v246, %v250
  %v253 = vsel %vm249, %v247, %v251
  %v254 = vpack.c.bf16 %v253, %v252
  %v255 = vld [vmem:[%s3] sm:$0xf]
  %v256 = vld [vmem:[%s3 + $0x4] sm:$0xf]
  %v257 = vld [vmem:[%s3 + $0x8] sm:$0xf]
  %v258 = vld [vmem:[%s3 + $0xc] sm:$0xf]
  %v259 = vlaneseq
  %v260 = vshrl.u32 %v259, 7
  %v261 = vsub.s32 0, %v260
  %v262 = vrot.slane %v29, %v261
  %v267 = vunpack.c.l.b16 %v255
  %v268 = vunpack.c.l.b16 %v256
  %v269 = vunpack.c.l.b16 %v257
  %v270 = vunpack.c.l.b16 %v258
  %v271 = vpack.c.b16 %v268, %v267
  %v272 = vpack.c.b16 %v270, %v269
  %v276 = vsel %vm55, %v254, 0
  %278 = vmatprep.subr.bf16.mxu0 0
  %279 = vmatpush1.bf16.msra.mxu0 0
  %280 = vmatprep.subr.bf16.mxu0 0
  %281 = vmatpush1.bf16.msra.mxu0 0
  %282 = vmatprep.subr.bf16.mxu0 0
  %283 = vmatpush1.bf16.msra.mxu0 0
  %284 = vmatprep.subr.bf16.mxu0 0
  %285 = vmatpush1.bf16.msra.mxu0 0
  %286 = vmatprep.subr.bf16.mxu0 0
  %287 = vmatpush1.bf16.msra.mxu0 0
  %288 = vmatprep.subr.bf16.mxu0 0
  %289 = vmatpush1.bf16.msra.mxu0 0
  %290 = vmatprep.subr.bf16.mxu0 0
  %291 = vmatpush1.bf16.msra.mxu0 %v272
  %292 = vmatprep.subr.bf16.mxu0 0
  %293 = vmatpush1.bf16.msra.mxu0 %v271
  %294 = vmatprep.subr.bf16.mxu0 0
  %295 = vmatpush2.bf16.msra.mxu0 0
  %296 = vmatprep.subr.bf16.mxu0 0
  %297 = vmatpush2.bf16.msra.mxu0 0
  %298 = vmatprep.subr.bf16.mxu0 0
  %299 = vmatpush2.bf16.msra.mxu0 0
  %300 = vmatprep.subr.bf16.mxu0 0
  %301 = vmatpush2.bf16.msra.mxu0 0
  %302 = vmatprep.subr.bf16.mxu0 0
  %303 = vmatpush2.bf16.msra.mxu0 0
  %304 = vmatprep.subr.bf16.mxu0 0
  %305 = vmatpush2.bf16.msra.mxu0 0
  %306 = vmatprep.subr.bf16.mxu0 0
  %307 = vmatpush2.bf16.msra.mxu0 0
  %308 = vmatprep.subr.bf16.mxu0 0
  %309 = vmatpush2.bf16.msra.mxu0 0
  %310 = vmatprep.mubr.bf16.mxu0 0
  %311 = vmatmul.mubr.bf16.gmra.mxu0 %v276
  %v312 = vpop.f32.mrf.mxu0
  %v313 = vadd.f32 %v262, %v312
  %v314 = vpop.f32.mrf.mxu0
  %v315 = vpop.f32.mrf.mxu0
  %v316 = vadd.f32 %v262, %v315
  %v317 = vpop.f32.mrf.mxu0
  %318 = vdwg.mxu0
  %319 = vst [vmem:[%s5] sm:$0xff] %v313
  %320 = vst [vmem:[%s5 + $0x8] sm:$0xff] %v316
  // Predicated region
  $region22: #{testing_policy_forward.1} parent=0 // pred_check
    _
  $region23: #{testing_policy_forward.1} parent=0 // pred_check_branch
    %322 = sbr.rel (0) target = $region25
  $region24: #{testing_policy_forward.1} parent=0 // pred_region
    _
  $region25: #{testing_policy_forward.1} parent=0 // pred_fallthru
    _
  // Predicated region
  $region26: #{testing_policy_forward.1} parent=0 // pred_check
    _
  $region27: #{testing_policy_forward.1} parent=0 // pred_check_branch
    %324 = sbr.rel (0) target = $region29
  $region28: #{testing_policy_forward.1} parent=0 // pred_region
    _
  $region29: #{testing_policy_forward.1} parent=0 // pred_fallthru
    _

</llo_original>
